<compile_context>
chip_gen: v6e
topology: v6e:2x2x1
jax: 0.10.0
libtpu: 0.0.40
codegen_flags: <defaults>
</compile_context>

<pallas_src>
import math
import functools

import jax
import jax.numpy as jnp
from jax import lax
from jax.experimental import pallas as pl
from jax.experimental.pallas import tpu as pltpu


def _linear_attention_kernel(x_ref, wqkv_ref, wprojh_ref, bproj_ref, o_ref, *,
                             num_heads, matmul_dtype):
    x = x_ref[0]                                   # (C, N)
    C, N = x.shape
    H = num_heads
    d = C // H

    # to_qkv: 1x1 conv without bias == channel matmul (MXU), f32 accumulation.
    qkv = jnp.dot(wqkv_ref[...].astype(matmul_dtype), x.astype(matmul_dtype),
                  preferred_element_type=jnp.float32)          # (3C, N)

    q = qkv[0:C].reshape(H, d, N)
    k = qkv[C:2 * C].reshape(H, d, N)
    v = qkv[2 * C:3 * C].reshape(H, d, N)

    # k.softmax(dim=-1): over spatial positions (lane axis). Elementwise math in f32.
    k = jnp.exp(k - jnp.max(k, axis=-1, keepdims=True))
    k = k * pl.reciprocal(jnp.sum(k, axis=-1, keepdims=True), approx=True)

    # q.softmax(dim=-2): over the d channels of each head (sublane axis).
    q = jnp.exp(q - jnp.max(q, axis=1, keepdims=True))
    q = q * pl.reciprocal(jnp.sum(q, axis=1, keepdims=True), approx=True)

    qm = q.astype(matmul_dtype)
    km = k.astype(matmul_dtype)
    vm = v.astype(matmul_dtype)

    # S_h = Q_h @ V_h^T  (d, d): contract the spatial axis; heads are the batch dim.
    s = lax.dot_general(qm, vm, (((2,), (2,)), ((0,), (0,))),
                        preferred_element_type=jnp.float32)    # (H, d, d)

    # Fuse proj_out's weight: T_h = W_proj[:, h*d:(h+1)*d] @ S_h   (C, d)
    t = lax.dot_general(wprojh_ref[...].astype(matmul_dtype), s.astype(matmul_dtype),
                        (((2,), (1,)), ((0,), (0,))),
                        preferred_element_type=jnp.float32)    # (H, C, d)

    # Y_h = T_h @ K_h  (C, N); then sum over heads and add proj_out's bias.
    y = lax.dot_general(t.astype(matmul_dtype), km, (((2,), (1,)), ((0,), (0,))),
                        preferred_element_type=jnp.float32)    # (H, C, N)
    y = jnp.sum(y, axis=0) + bproj_ref[...]                    # (C, N)

    o_ref[0] = y.astype(o_ref.dtype)


def linear_attention(x, w_qkv, w_proj, b_proj, num_heads=1, matmul_dtype=jnp.float32):
    """x: (B, C, H, W) NCHW like PyTorch. Returns (B, C, H, W) float32.

    matmul_dtype: pass jnp.bfloat16 on v5e/v6e for ~2x MXU throughput and half the
    VMEM footprint of the qkv intermediates (softmax + accumulation remain f32).
    Default f32 preserves strict numerical agreement with the PyTorch module.
    """
    B, C, Hh, Ww = x.shape
    assert C % num_heads == 0, "num_heads must divide channels"
    d = C // num_heads
    N = Hh * Ww

    x_flat = x.reshape(B, C, N).astype(jnp.float32)
    w_qkv = jnp.asarray(w_qkv, jnp.float32).reshape(3 * C, C)
    # Pre-split the proj weight per head in the wrapper (avoids an in-kernel
    # transpose):  wproj_h[h, c, e] = W_proj[c, h*d + e]
    wproj_h = jnp.asarray(w_proj, jnp.float32).reshape(C, num_heads, d).transpose(1, 0, 2)
    bproj_col = jnp.asarray(b_proj, jnp.float32).reshape(C, 1)

    flops = 2 * B * N * 3 * C * C                   # qkv channel matmul
    flops += 2 * B * num_heads * d * d * N          # S = Q V^T
    flops += 2 * B * num_heads * C * d * d          # T = Wp_h S
    flops += 2 * B * num_heads * C * d * N          # Y = T K
    cost = pl.CostEstimate(
        flops=flops,
        transcendentals=2 * B * C * N,              # exps of the two softmaxes
        bytes_accessed=4 * (2 * B * C * N + 3 * C * C + C * C + C))

    kernel = functools.partial(_linear_attention_kernel,
                               num_heads=num_heads, matmul_dtype=matmul_dtype)

    # TODO(synk): for very large C*N (e.g. C>=256 with N>=4096 on v7x's 64 MiB
    # VMEM), add a spatial-N tile axis with a two-pass k-softmax and an S
    # accumulator so the per-step residency stays within the VMEM budget.
    out = pl.pallas_call(
        kernel,
        out_shape=jax.ShapeDtypeStruct((B, C, N), jnp.float32),
        grid_spec=pltpu.PrefetchScalarGridSpec(
            num_scalar_prefetch=0,
            grid=(B,),
            in_specs=[
                pl.BlockSpec((1, C, N), lambda b: (b, 0, 0)),
                pl.BlockSpec((3 * C, C), lambda b: (0, 0)),
                pl.BlockSpec((num_heads, C, d), lambda b: (0, 0, 0)),
                pl.BlockSpec((C, 1), lambda b: (0, 0)),
            ],
            out_specs=pl.BlockSpec((1, C, N), lambda b: (b, 0, 0)),
        ),
        compiler_params=pltpu.CompilerParams(dimension_semantics=("parallel",)),
        cost_estimate=cost,
    )(x_flat, w_qkv, wproj_h, bproj_col)
    return out.reshape(B, C, Hh, Ww)


def linear_attention_reference(x, w_qkv, w_proj, b_proj, num_heads=1):
    """Pure-JAX mirror of the PyTorch forward (keeps the O(N^2) context), for checking."""
    B, C, Hh, Ww = x.shape
    N = Hh * Ww
    qkv = jnp.einsum('oc,bchw->bohw', w_qkv, x)
    q, k, v = jnp.split(qkv, 3, axis=1)
    q = q.reshape(B, num_heads, -1, N)
    k = k.reshape(B, num_heads, -1, N)
    v = v.reshape(B, num_heads, -1, N)
    k = jax.nn.softmax(k, axis=-1)
    q = jax.nn.softmax(q, axis=-2)
    context = jnp.einsum('bhcn,bhct->bhnt', k, v)
    out = jnp.einsum('bhct,bhnt->bhcn', q, context)
    out = out.reshape(B, C, Hh, Ww)
    return jnp.einsum('oc,bchw->bohw', w_proj, out) + b_proj[None, :, None, None]


if __name__ == "__main__":
    root = jax.random.PRNGKey(0)

    def run_case(key, B, C, Hh, Ww, num_heads):
        kx, k1, k2, k3 = jax.random.split(key, 4)
        x = jax.random.normal(kx, (B, C, Hh, Ww), jnp.float32)
        # Synthetic parameters; shapes follow nn.Conv2d(channels, ..., 1) 1x1 kernels.
        w_qkv = jax.random.normal(k1, (3 * C, C), jnp.float32) * (1.0 / math.sqrt(C))
        w_proj = jax.random.normal(k2, (C, C), jnp.float32) * (1.0 / math.sqrt(C))
        b_proj = jax.random.normal(k3, (C,), jnp.float32) * 0.1

        y = linear_attention(x, w_qkv, w_proj, b_proj, num_heads=num_heads)
        jax.block_until_ready(y)

        y_ref = linear_attention_reference(x, w_qkv, w_proj, b_proj, num_heads=num_heads)
        assert y.shape == (B, C, Hh, Ww)
        # Tolerance covers the approx EUP reciprocal used for the softmax
        # denominators; all other math is f32 with f32 accumulation.
        assert jnp.allclose(y, y_ref, atol=1e-2, rtol=1e-2), (
            f"Pallas kernel mismatch vs reference (num_heads={num_heads})")

    k0, k1 = jax.random.split(root)
    run_case(k0, B=2, C=4, Hh=16, Ww=16, num_heads=1)    # module defaults
    run_case(k1, B=2, C=16, Hh=16, Ww=16, num_heads=2)   # multi-head, d=8 (sublane-aligned)

    print("KERNEL_OK")
</pallas_src>

<mosaic_0001>
module attributes {stable_mosaic.version = 11 : i64} {
  func.func @_linear_attention_kernel(%arg0: i32, %arg1: memref<1x4x256xf32, #tpu.memory_space<vmem>>, %arg2: memref<12x4xf32, #tpu.memory_space<vmem>>, %arg3: memref<1x4x4xf32, #tpu.memory_space<vmem>>, %arg4: memref<4x1xf32, #tpu.memory_space<vmem>>, %arg5: memref<1x4x256xf32, #tpu.memory_space<vmem>>) attributes {dimension_semantics = [#tpu.dimension_semantics<parallel>], iteration_bounds = array<i64: 2>, scalar_prefetch = 0 : i64, scratch_operands = 0 : i64, tpu.core_type = #tpu.core_type<tc>, window_params = [{transform_indices = @transform_0, window_bounds = array<i64: 1, 4, 256>}, {pipeline_mode = #tpu.pipeline_mode<synchronous>, transform_indices = @transform_1, window_bounds = array<i64: 12, 4>}, {pipeline_mode = #tpu.pipeline_mode<synchronous>, transform_indices = @transform_2, window_bounds = array<i64: 1, 4, 4>}, {pipeline_mode = #tpu.pipeline_mode<synchronous>, transform_indices = @transform_3, window_bounds = array<i64: 4, 1>}, {transform_indices = @transform_4, window_bounds = array<i64: 1, 4, 256>}]} {
    %c0 = arith.constant 0 : index
    %c0_0 = arith.constant 0 : index
    %c0_1 = arith.constant 0 : index
    %0 = vector.load %arg1[%c0, %c0_0, %c0_1] : memref<1x4x256xf32, #tpu.memory_space<vmem>>, vector<1x4x256xf32>
    %1 = vector.shape_cast %0 : vector<1x4x256xf32> to vector<4x256xf32>
    %c0_2 = arith.constant 0 : index
    %c0_3 = arith.constant 0 : index
    %2 = vector.load %arg2[%c0_2, %c0_3] : memref<12x4xf32, #tpu.memory_space<vmem>>, vector<12x4xf32>
    %cst = arith.constant dense<0.000000e+00> : vector<12x256xf32>
    %3 = tpu.matmul %2, %1, %cst {dimension_numbers = #tpu.dot_dimension_numbers<[1], [0], [0], [1], [0, 0, 1, 1], [], []>} : vector<12x4xf32>, vector<4x256xf32>, vector<12x256xf32> -> vector<12x256xf32>
    %4 = vector.extract_strided_slice %3 {offsets = [0, 0], sizes = [4, 256], strides = [1, 1]} : vector<12x256xf32> to vector<4x256xf32>
    %5 = vector.shape_cast %4 : vector<4x256xf32> to vector<1x4x256xf32>
    %6 = vector.extract_strided_slice %3 {offsets = [4, 0], sizes = [4, 256], strides = [1, 1]} : vector<12x256xf32> to vector<4x256xf32>
    %7 = vector.shape_cast %6 : vector<4x256xf32> to vector<1x4x256xf32>
    %8 = vector.extract_strided_slice %3 {offsets = [8, 0], sizes = [4, 256], strides = [1, 1]} : vector<12x256xf32> to vector<4x256xf32>
    %9 = vector.shape_cast %8 : vector<4x256xf32> to vector<1x4x256xf32>
    %cst_4 = arith.constant dense<0xFF800000> : vector<1x4xf32>
    %10 = vector.multi_reduction <maximumf>, %7, %cst_4 [2] : vector<1x4x256xf32> to vector<1x4xf32>
    %11 = vector.shape_cast %10 : vector<1x4xf32> to vector<1x4x1xf32>
    %12 = vector.broadcast %11 : vector<1x4x1xf32> to vector<1x4x256xf32>
    %13 = arith.subf %7, %12 : vector<1x4x256xf32>
    %14 = math.exp %13 : vector<1x4x256xf32>
    %cst_5 = arith.constant dense<0.000000e+00> : vector<1x4xf32>
    %15 = vector.multi_reduction <add>, %14, %cst_5 [2] : vector<1x4x256xf32> to vector<1x4xf32>
    %16 = vector.shape_cast %15 : vector<1x4xf32> to vector<1x4x1xf32>
    %17 = tpu.reciprocal %16 {approx = true} : vector<1x4x1xf32> -> vector<1x4x1xf32>
    %18 = vector.broadcast %17 : vector<1x4x1xf32> to vector<1x4x256xf32>
    %19 = arith.mulf %14, %18 : vector<1x4x256xf32>
    %cst_6 = arith.constant dense<0xFF800000> : vector<1x256xf32>
    %20 = vector.multi_reduction <maximumf>, %5, %cst_6 [1] : vector<1x4x256xf32> to vector<1x256xf32>
    %21 = vector.shape_cast %20 : vector<1x256xf32> to vector<1x1x256xf32>
    %22 = vector.broadcast %21 : vector<1x1x256xf32> to vector<1x4x256xf32>
    %23 = arith.subf %5, %22 : vector<1x4x256xf32>
    %24 = math.exp %23 : vector<1x4x256xf32>
    %cst_7 = arith.constant dense<0.000000e+00> : vector<1x256xf32>
    %25 = vector.multi_reduction <add>, %24, %cst_7 [1] : vector<1x4x256xf32> to vector<1x256xf32>
    %26 = vector.shape_cast %25 : vector<1x256xf32> to vector<1x1x256xf32>
    %27 = tpu.reciprocal %26 {approx = true} : vector<1x1x256xf32> -> vector<1x1x256xf32>
    %28 = vector.broadcast %27 : vector<1x1x256xf32> to vector<1x4x256xf32>
    %29 = arith.mulf %24, %28 : vector<1x4x256xf32>
    %cst_8 = arith.constant dense<0.000000e+00> : vector<1x4x4xf32>
    %30 = tpu.matmul %29, %9, %cst_8 {dimension_numbers = #tpu.dot_dimension_numbers<[2], [2], [1], [1], [0, 0, 0, 1, 1, 1], [0], [0]>} : vector<1x4x256xf32>, vector<1x4x256xf32>, vector<1x4x4xf32> -> vector<1x4x4xf32>
    %c0_9 = arith.constant 0 : index
    %c0_10 = arith.constant 0 : index
    %c0_11 = arith.constant 0 : index
    %31 = vector.load %arg3[%c0_9, %c0_10, %c0_11] : memref<1x4x4xf32, #tpu.memory_space<vmem>>, vector<1x4x4xf32>
    %cst_12 = arith.constant dense<0.000000e+00> : vector<1x4x4xf32>
    %32 = tpu.matmul %31, %30, %cst_12 {dimension_numbers = #tpu.dot_dimension_numbers<[2], [1], [1], [2], [0, 0, 0, 1, 1, 2], [0], [0]>} : vector<1x4x4xf32>, vector<1x4x4xf32>, vector<1x4x4xf32> -> vector<1x4x4xf32>
    %cst_13 = arith.constant dense<0.000000e+00> : vector<1x4x256xf32>
    %33 = tpu.matmul %32, %19, %cst_13 {dimension_numbers = #tpu.dot_dimension_numbers<[2], [1], [1], [2], [0, 0, 0, 1, 1, 2], [0], [0]>} : vector<1x4x4xf32>, vector<1x4x256xf32>, vector<1x4x256xf32> -> vector<1x4x256xf32>
    %cst_14 = arith.constant dense<0.000000e+00> : vector<4x256xf32>
    %34 = vector.multi_reduction <add>, %33, %cst_14 [0] : vector<1x4x256xf32> to vector<4x256xf32>
    %c0_15 = arith.constant 0 : index
    %c0_16 = arith.constant 0 : index
    %35 = vector.load %arg4[%c0_15, %c0_16] : memref<4x1xf32, #tpu.memory_space<vmem>>, vector<4x1xf32>
    %36 = vector.broadcast %35 : vector<4x1xf32> to vector<4x256xf32>
    %37 = arith.addf %34, %36 : vector<4x256xf32>
    %c0_17 = arith.constant 0 : index
    %c0_18 = arith.constant 0 : index
    %c0_19 = arith.constant 0 : index
    %38 = vector.load %arg5[%c0_17, %c0_18, %c0_19] : memref<1x4x256xf32, #tpu.memory_space<vmem>>, vector<1x4x256xf32>
    %39 = vector.shape_cast %38 : vector<1x4x256xf32> to vector<4x256xf32>
    %40 = vector.shape_cast %37 : vector<4x256xf32> to vector<1x4x256xf32>
    tpu.vector_store %arg5[%c0_17, %c0_18, %c0_19], %40 {strides = array<i32>} : memref<1x4x256xf32, #tpu.memory_space<vmem>>, vector<1x4x256xf32>,
    return
  }
  func.func @transform_0(%arg0: i32) -> (i32, i32, i32) {
    %c0_i32 = arith.constant 0 : i32
    %c0_i32_0 = arith.constant 0 : i32
    %c0_i32_1 = arith.constant 0 : i32
    return %arg0, %c0_i32, %c0_i32_0 : i32, i32, i32
  }
  func.func @transform_1(%arg0: i32) -> (i32, i32) {
    %c0_i32 = arith.constant 0 : i32
    %c0_i32_0 = arith.constant 0 : i32
    %c0_i32_1 = arith.constant 0 : i32
    return %c0_i32, %c0_i32_0 : i32, i32
  }
  func.func @transform_2(%arg0: i32) -> (i32, i32, i32) {
    %c0_i32 = arith.constant 0 : i32
    %c0_i32_0 = arith.constant 0 : i32
    %c0_i32_1 = arith.constant 0 : i32
    %c0_i32_2 = arith.constant 0 : i32
    return %c0_i32, %c0_i32_0, %c0_i32_1 : i32, i32, i32
  }
  func.func @transform_3(%arg0: i32) -> (i32, i32) {
    %c0_i32 = arith.constant 0 : i32
    %c0_i32_0 = arith.constant 0 : i32
    %c0_i32_1 = arith.constant 0 : i32
    return %c0_i32, %c0_i32_0 : i32, i32
  }
  func.func @transform_4(%arg0: i32) -> (i32, i32, i32) {
    %c0_i32 = arith.constant 0 : i32
    %c0_i32_0 = arith.constant 0 : i32
    %c0_i32_1 = arith.constant 0 : i32
    return %arg0, %c0_i32, %c0_i32_0 : i32, i32, i32
  }
}

</mosaic_0001>

<llo_original>
// kernel: tpu_custom_call.1
$region0: #{tpu_custom_call.1}
  #allocation0 [shape = 'u32[]', space=smem, size = 0x4, offset = 0x4, fixed_abs, tag = 'smem constant byte address 0x4 - core index']
  #allocation1 [shape = 'u32[144,128]{1,0:T(1,128)}', space=vmem, size = 0x12000, scoped, tag = 'internal scratch']
  %s0 = inlined_call_operand.vmem [shape: f32[2,4,256], index: 0, kind: input, shape index: {}]
  %s1 = inlined_call_operand.vmem [shape: f32[12,4], index: 1, kind: input, shape index: {}]
  %s2 = inlined_call_operand.vmem [shape: f32[1,4,4], index: 2, kind: input, shape index: {}]
  %s3 = inlined_call_operand.vmem [shape: f32[4,1], index: 3, kind: input, shape index: {}]
  %s4 = inlined_call_operand.hbm [shape: f32[2,4,256], index: 4, kind: output, shape index: {}]
  %s5 = sld [smem:[#allocation0]]
  $region49: #{tpu_custom_call.1} parent=0
    _
  %s7 = ssub.s32 1, %s5
  %s8 = scalar_select 0, %s7, %s5
  $region1: #{tpu_custom_call.1} parent=0
    #allocation2 [shape = 'u8[8192]{0}', space=vmem, size = 0x2000, scoped, tag = 'output window, operand 0']
    #allocation3 [shape = 's32[2]{0}', space=sflag, size = 0x8, scoped, tag = 'scoped memory for tpu_custom_call.1']
    %9 = vsyncpa [#allocation3], 0
    %s10 = scalar_lea.sflag [#allocation3], 1
    %11 = vsyncpa %s10, 0
    loop: start=0, step=1, limit=4
    $region2: #{tpu_custom_call.1} parent=1 // loop_pre_header
      _
    $region3: #{tpu_custom_call.1} parent=1 // loop_header
      %s13 = sphi 0, %s17
      %p14 = scmp.ge.s32.totalorder %s13, 4
      %s23 = sphi 0, %s25
      %s26 = sphi 0, %s23
      %s27 = sphi 0, %s26
      %s43 = sphi 0, %s27
      %s47 = sphi 0, %s47
      %s49 = sphi 0, %s47
      %s50 = sphi 0, %s49
      %s64 = sphi 0, %s50
      %s68 = sphi 0, %s68
      %s70 = sphi 0, %s68
      %s71 = sphi 0, %s70
      %s85 = sphi 0, %s71
      %s89 = sphi 0, %s89
      %s91 = sphi 0, %s89
      %s92 = sphi 0, %s91
      %s106 = sphi 0, %s92
      %s112 = sphi 0, %s114
      %s115 = sphi 0, %s112
      %s116 = sphi 0, %s115
      %s132 = sphi 0, %s116
    $region4: #{tpu_custom_call.1} parent=1 // loop_header_branch
      %16 = sbr.rel (%p14) target = $region8
    $region5: #{tpu_custom_call.1} parent=1 // loop_body
      %s18 = ssub.s32 %s13, 1
      %s19 = ssub.s32 %s13, 2
      %s20 = sadd.s32 %s13, 1
      %s21 = ssub.s32 %s13, %s20
      %p22 = scmp.eq.s32.totalorder %s21, 0
      %s24 = sadd.s32 %s23, 1
      %s25 = scalar_select %p22, %s23, %s24
      %p28 = pneg %p22
      %p29 = scmp.eq.s32.totalorder %s13, 1
      %p30 = por %p28, %p29
      %p31 = scmp.ne.s32.totalorder %s23, %s26
      %p32 = scmp.eq.s32.totalorder %s13, 0
      %p33 = por %p31, %p32
      %p34 = scmp.ne.s32.totalorder %s23, %s26
      %p35 = scmp.eq.s32.totalorder %s18, 1
      %p36 = por %p34, %p35
      %p37 = scmp.ne.s32.totalorder %s26, %s27
      %p38 = scmp.eq.s32.totalorder %s18, 0
      %p39 = por %p37, %p38
      %p40 = scmp.ne.s32.totalorder %s26, %s27
      %p41 = scmp.eq.s32.totalorder %s19, 1
      %p42 = por %p40, %p41
      %p44 = scmp.ne.s32.totalorder %s27, %s43
      %p45 = scmp.eq.s32.totalorder %s19, 0
      %p46 = por %p44, %p45
      %s48 = sadd.s32 %s47, 1
      %p51 = scmp.eq.s32.totalorder %s13, 1
      %p52 = scmp.ne.s32.totalorder %s47, %s49
      %p53 = scmp.eq.s32.totalorder %s13, 0
      %p54 = por %p52, %p53
      %p55 = scmp.ne.s32.totalorder %s47, %s49
      %p56 = scmp.eq.s32.totalorder %s18, 1
      %p57 = por %p55, %p56
      %p58 = scmp.ne.s32.totalorder %s49, %s50
      %p59 = scmp.eq.s32.totalorder %s18, 0
      %p60 = por %p58, %p59
      %p61 = scmp.ne.s32.totalorder %s49, %s50
      %p62 = scmp.eq.s32.totalorder %s19, 1
      %p63 = por %p61, %p62
      %p65 = scmp.ne.s32.totalorder %s50, %s64
      %p66 = scmp.eq.s32.totalorder %s19, 0
      %p67 = por %p65, %p66
      %s69 = sadd.s32 %s68, 1
      %p72 = scmp.eq.s32.totalorder %s13, 1
      %p73 = scmp.ne.s32.totalorder %s68, %s70
      %p74 = scmp.eq.s32.totalorder %s13, 0
      %p75 = por %p73, %p74
      %p76 = scmp.ne.s32.totalorder %s68, %s70
      %p77 = scmp.eq.s32.totalorder %s18, 1
      %p78 = por %p76, %p77
      %p79 = scmp.ne.s32.totalorder %s70, %s71
      %p80 = scmp.eq.s32.totalorder %s18, 0
      %p81 = por %p79, %p80
      %p82 = scmp.ne.s32.totalorder %s70, %s71
      %p83 = scmp.eq.s32.totalorder %s19, 1
      %p84 = por %p82, %p83
      %p86 = scmp.ne.s32.totalorder %s71, %s85
      %p87 = scmp.eq.s32.totalorder %s19, 0
      %p88 = por %p86, %p87
      %s90 = sadd.s32 %s89, 1
      %p93 = scmp.eq.s32.totalorder %s13, 1
      %p94 = scmp.ne.s32.totalorder %s89, %s91
      %p95 = scmp.eq.s32.totalorder %s13, 0
      %p96 = por %p94, %p95
      %p97 = scmp.ne.s32.totalorder %s89, %s91
      %p98 = scmp.eq.s32.totalorder %s18, 1
      %p99 = por %p97, %p98
      %p100 = scmp.ne.s32.totalorder %s91, %s92
      %p101 = scmp.eq.s32.totalorder %s18, 0
      %p102 = por %p100, %p101
      %p103 = scmp.ne.s32.totalorder %s91, %s92
      %p104 = scmp.eq.s32.totalorder %s19, 1
      %p105 = por %p103, %p104
      %p107 = scmp.ne.s32.totalorder %s92, %s106
      %p108 = scmp.eq.s32.totalorder %s19, 0
      %p109 = por %p107, %p108
      %s110 = ssub.s32 %s13, %s20
      %p111 = scmp.eq.s32.totalorder %s110, 0
      %s113 = sadd.s32 %s112, 1
      %s114 = scalar_select %p111, %s112, %s113
      %p117 = pneg %p111
      %p118 = scmp.eq.s32.totalorder %s13, 1
      %p119 = por %p117, %p118
      %p120 = scmp.ne.s32.totalorder %s112, %s115
      %p121 = scmp.eq.s32.totalorder %s13, 0
      %p122 = por %p120, %p121
      %p123 = scmp.ne.s32.totalorder %s112, %s115
      %p124 = scmp.eq.s32.totalorder %s18, 1
      %p125 = por %p123, %p124
      %p126 = scmp.ne.s32.totalorder %s115, %s116
      %p127 = scmp.eq.s32.totalorder %s18, 0
      %p128 = por %p126, %p127
      %p129 = scmp.ne.s32.totalorder %s115, %s116
      %p130 = scmp.eq.s32.totalorder %s19, 1
      %p131 = por %p129, %p130
      %p133 = scmp.ne.s32.totalorder %s116, %s132
      %p134 = scmp.eq.s32.totalorder %s19, 0
      %p135 = por %p133, %p134
      %p136 = scmp.le.s32.totalorder 1, %s13
      %p137 = scmp.lt.s32.totalorder %s13, 3
      %p138 = pnand %p136, %p137
      %p139 = pneg %p138
      // Predicated region
      $region9: #{tpu_custom_call.1} parent=5 // pred_check
        _
      $region10: #{tpu_custom_call.1} parent=5 // pred_check_branch
        %141 = sbr.rel (%p138) target = $region12
      $region11: #{tpu_custom_call.1} parent=5 // pred_region
        %s142 = ssub.s32 %s13, 1
        // Predicated region
        $region13: #{tpu_custom_call.1} parent=11 // pred_check
          %p143 = pneg %p60
        $region14: #{tpu_custom_call.1} parent=11 // pred_check_branch
          %145 = sbr.rel (%p143) target = $region16
        $region15: #{tpu_custom_call.1} parent=11 // pred_region
          _
        $region16: #{tpu_custom_call.1} parent=11 // pred_fallthru
          _
        // Predicated region
        $region17: #{tpu_custom_call.1} parent=11 // pred_check
          %p146 = pneg %p81
        $region18: #{tpu_custom_call.1} parent=11 // pred_check_branch
          %148 = sbr.rel (%p146) target = $region20
        $region19: #{tpu_custom_call.1} parent=11 // pred_region
          _
        $region20: #{tpu_custom_call.1} parent=11 // pred_fallthru
          _
        // Predicated region
        $region21: #{tpu_custom_call.1} parent=11 // pred_check
          %p149 = pneg %p102
        $region22: #{tpu_custom_call.1} parent=11 // pred_check_branch
          %151 = sbr.rel (%p149) target = $region24
        $region23: #{tpu_custom_call.1} parent=11 // pred_region
          _
        $region24: #{tpu_custom_call.1} parent=11 // pred_fallthru
          _
      $region12: #{tpu_custom_call.1} parent=5 // pred_fallthru
        _
      %p152 = scmp.lt.s32.totalorder %s13, 2
      // Predicated region
      $region25: #{tpu_custom_call.1} parent=5 // pred_check
        %p153 = pneg %p152
      $region26: #{tpu_custom_call.1} parent=5 // pred_check_branch
        %155 = sbr.rel (%p153) target = $region28
      $region27: #{tpu_custom_call.1} parent=5 // pred_region
        // Predicated region
        $region29: #{tpu_custom_call.1} parent=27 // pred_check
          %p156 = pneg %p33
        $region30: #{tpu_custom_call.1} parent=27 // pred_check_branch
          %158 = sbr.rel (%p156) target = $region32
        $region31: #{tpu_custom_call.1} parent=27 // pred_region
          %p159 = scmp.lt.s32.totalorder %s13, 1
          %s160 = scalar_select %p159, %s13, 1
          %s161 = smul.addr %s160, 2
          %s162 = smul.addr %s161, 4
          %s163 = scalar_lea.vmem %s0, %s162
        $region32: #{tpu_custom_call.1} parent=27 // pred_fallthru
          _
      $region28: #{tpu_custom_call.1} parent=5 // pred_fallthru
        _
      %p164 = scmp.le.s32.totalorder 1, %s13
      %p165 = scmp.lt.s32.totalorder %s13, 3
      %p166 = pnand %p164, %p165
      %p167 = pneg %p166
      // Predicated region
      $region33: #{tpu_custom_call.1} parent=5 // pred_check
        _
      $region34: #{tpu_custom_call.1} parent=5 // pred_check_branch
        %169 = sbr.rel (%p166) target = $region36
      $region35: #{tpu_custom_call.1} parent=5 // pred_region
        %s170 = ssub.s32 %s13, 1
        %p171 = scmp.lt.s32.totalorder %s18, 1
        %s172 = scalar_select %p171, %s18, 1
        %s173 = smul.addr %s172, 2
        %s174 = smul.addr %s173, 4
        %s175 = scalar_lea.vmem %s0, %s174
        %p176 = pneg %p39
        %p177 = pneg %p36
        %p178 = pneg %p60
        %p179 = pneg %p57
        %p180 = pneg %p81
        %p181 = pneg %p78
        %p182 = pneg %p102
        %p183 = pneg %p99
        %p184 = pneg %p128
        %p185 = pneg %p125
        %s186 = sand.u32 %s115, 1
        %s187 = scalar_lea.sflag [#allocation3], %s186
        %s188 = sand.u32 %s115, 1
        %s189 = smul.addr %s188, 8
        %s190 = scalar_lea.vmem [#allocation2], %s189
        %p191 = scmp.lt.s32.totalorder %s18, 1
        %s192 = scalar_select %p191, %s18, 1
        %s193 = smul.addr %s192, 2
        %s194 = smul.addr %s193, 4
        %s195 = scalar_lea.vmem %s0, %s194
        %v196 = vld [vmem:[%s195] sm:$0xff]
        %v197 = vld [vmem:[%s1] sm:$0xff]
        %v198 = vld [vmem:[%s1 + $0x8] sm:$0xf]
        %v200 = vcombine.high %v196, %v196
        %vm201 = vcmask 31744
        %v203 = vsel %vm201, %v197, 0
        %v206 = vsel %vm201, %v198, 0
        %vm208 = vcmask 1043456
        %v209 = vsel %vm208, %v196, 0
        %v211 = vsel %vm208, %v200, 0
        %213 = vmatprep.subr.mxu0 0.0
        %214 = vmatpush1.msra.mxu0 0.0
        %215 = vmatprep.subr.mxu0 0.0
        %216 = vmatpush1.msra.mxu0 0.0
        %217 = vmatprep.subr.mxu0 0.0
        %218 = vmatpush1.msra.mxu0 0.0
        %219 = vmatprep.subr.mxu0 0.0
        %220 = vmatpush1.msra.mxu0 0.0
        %221 = vmatprep.subr.mxu0 0.0
        %222 = vmatpush1.msra.mxu0 0.0
        %223 = vmatprep.subr.mxu0 0.0
        %224 = vmatpush1.msra.mxu0 0.0
        %225 = vmatprep.subr.mxu0 0.0
        %226 = vmatpush1.msra.mxu0 0.0
        %227 = vmatprep.subr.mxu0 0.0
        %228 = vmatpush1.msra.mxu0 0.0
        %229 = vmatprep.subr.mxu0 0.0
        %230 = vmatpush1.msra.mxu0 0.0
        %231 = vmatprep.subr.mxu0 0.0
        %232 = vmatpush1.msra.mxu0 0.0
        %233 = vmatprep.subr.mxu0 0.0
        %234 = vmatpush1.msra.mxu0 0.0
        %235 = vmatprep.subr.mxu0 0.0
        %236 = vmatpush1.msra.mxu0 0.0
        %237 = vmatprep.subr.mxu0 0.0
        %238 = vmatpush1.msra.mxu0 0.0
        %239 = vmatprep.subr.mxu0 0.0
        %240 = vmatpush1.msra.mxu0 0.0
        %241 = vmatprep.subr.mxu0 0.0
        %242 = vmatpush1.msra.mxu0 0.0
        %243 = vmatprep.subr.mxu0 %v211
        %244 = vmatpush1.msra.mxu0 %v209
        %245 = vmatprep.subr.mxu0 0.0
        %246 = vmatpush2.msra.mxu0 0.0
        %247 = vmatprep.subr.mxu0 0.0
        %248 = vmatpush2.msra.mxu0 0.0
        %249 = vmatprep.subr.mxu0 0.0
        %250 = vmatpush2.msra.mxu0 0.0
        %251 = vmatprep.subr.mxu0 0.0
        %252 = vmatpush2.msra.mxu0 0.0
        %253 = vmatprep.subr.mxu0 0.0
        %254 = vmatpush2.msra.mxu0 0.0
        %255 = vmatprep.subr.mxu0 0.0
        %256 = vmatpush2.msra.mxu0 0.0
        %257 = vmatprep.subr.mxu0 0.0
        %258 = vmatpush2.msra.mxu0 0.0
        %259 = vmatprep.subr.mxu0 0.0
        %260 = vmatpush2.msra.mxu0 0.0
        %261 = vmatprep.subr.mxu0 0.0
        %262 = vmatpush2.msra.mxu0 0.0
        %263 = vmatprep.subr.mxu0 0.0
        %264 = vmatpush2.msra.mxu0 0.0
        %265 = vmatprep.subr.mxu0 0.0
        %266 = vmatpush2.msra.mxu0 0.0
        %267 = vmatprep.subr.mxu0 0.0
        %268 = vmatpush2.msra.mxu0 0.0
        %269 = vmatprep.subr.mxu0 0.0
        %270 = vmatpush2.msra.mxu0 0.0
        %271 = vmatprep.subr.mxu0 0.0
        %272 = vmatpush2.msra.mxu0 0.0
        %273 = vmatprep.subr.mxu0 0.0
        %274 = vmatpush2.msra.mxu0 0.0
        %275 = vmatprep.subr.mxu0 0.0
        %276 = vmatpush2.msra.mxu0 0.0
        %277 = vmatprep.mubr.f32.mxu0 0.0
        %278 = vmatmul.mubr.f32.gmra.mxu0 %v203
        %v279 = vpop.f32.mrf.mxu0
        %v280 = vadd.f32 0.0, %v279
        %v281 = vpop.f32.mrf.mxu0
        %v282 = vadd.f32 0.0, %v281
        %283 = vmatprep.mubr.f32.mxu0 0.0
        %284 = vmatmul.mubr.f32.gmra.mxu0 %v206
        %v285 = vpop.f32.mrf.mxu0
        %v286 = vadd.f32 0.0, %v285
        %v287 = vpop.f32.mrf.mxu0
        %v288 = vadd.f32 0.0, %v287
        %289 = vdwg.mxu0
        %vm290 = vcmask 1047556
        %v291 = vsel %vm290, %v280, -inf
        %v292 = vsel %vm290, %v282, -inf
        %v293 = vmax.f32 %v291, %v292
        %294 = vmax.xlane.f32.xlu0 %v293
        %v295 = vpop.xlane.xlu0 %294
        %v296 = vsub.f32 %v280, %v295
        %v297 = vsub.f32 %v282, %v295
        %v298 = vmul.f32 %v296, 1.442695
        %v299 = vpow.pop %v298
        %v300 = vmul.f32 %v297, 1.442695
        %v301 = vpow.pop %v300
        %v302 = vsel %vm290, %v299, 0.0
        %v303 = vsel %vm290, %v301, 0.0
        %v304 = vadd.f32 %v302, %v303
        %305 = vadd.xlane.f32.xlu0 %v304
        %v306 = vpop.xlane.xlu0 %305
        %v307 = vrcp.pop %v306
        %v308 = vmul.f32 %v299, %v307
        %v309 = vmul.f32 %v301, %v307
        %v310 = vsel %vm208, %v280, -inf
        %v311 = vrot.slane %v310, 4
        %v312 = vmax.f32 %v310, %v311
        %v313 = vrot.slane %v312, 2
        %v314 = vmax.f32 %v312, %v313
        %v315 = vrot.slane %v314, 1
        %v316 = vmax.f32 %v314, %v315
        %v317 = vsel %vm208, %v282, -inf
        %v318 = vrot.slane %v317, 4
        %v319 = vmax.f32 %v317, %v318
        %v320 = vrot.slane %v319, 2
        %v321 = vmax.f32 %v319, %v320
        %v322 = vrot.slane %v321, 1
        %v323 = vmax.f32 %v321, %v322
        %v324 = vsub.f32 %v280, %v316
        %v325 = vsub.f32 %v282, %v323
        %v326 = vmul.f32 %v324, 1.442695
        %v327 = vpow.pop %v326
        %v328 = vmul.f32 %v325, 1.442695
        %v329 = vpow.pop %v328
        %v330 = vsel %vm208, %v327, 0.0
        %v331 = vrot.slane %v330, 4
        %v332 = vadd.f32 %v330, %v331
        %v333 = vrot.slane %v332, 2
        %v334 = vadd.f32 %v332, %v333
        %v335 = vrot.slane %v334, 1
        %v336 = vadd.f32 %v334, %v335
        %v337 = vsel %vm208, %v329, 0.0
        %v338 = vrot.slane %v337, 4
        %v339 = vadd.f32 %v337, %v338
        %v340 = vrot.slane %v339, 2
        %v341 = vadd.f32 %v339, %v340
        %v342 = vrot.slane %v341, 1
        %v343 = vadd.f32 %v341, %v342
        %v344 = vrcp.pop %v336
        %v345 = vrcp.pop %v343
        %v346 = vmul.f32 %v327, %v344
        %v347 = vmul.f32 %v329, %v345
        %348 = vmatprep.subr.mxu0 0.0
        %349 = vmatpush1.xpose.msra.mxu0 0.0
        %350 = vmatprep.subr.mxu0 0.0
        %351 = vmatpush1.xpose.msra.mxu0 0.0
        %352 = vmatprep.subr.mxu0 0.0
        %353 = vmatpush1.xpose.msra.mxu0 0.0
        %354 = vmatprep.subr.mxu0 0.0
        %355 = vmatpush1.xpose.msra.mxu0 0.0
        %356 = vmatprep.subr.mxu0 0.0
        %357 = vmatpush1.xpose.msra.mxu0 0.0
        %358 = vmatprep.subr.mxu0 0.0
        %359 = vmatpush1.xpose.msra.mxu0 0.0
        %360 = vmatprep.subr.mxu0 0.0
        %361 = vmatpush1.xpose.msra.mxu0 0.0
        %362 = vmatprep.subr.mxu0 0.0
        %363 = vmatpush1.xpose.msra.mxu0 0.0
        %364 = vmatprep.subr.mxu0 0.0
        %365 = vmatpush1.xpose.msra.mxu0 0.0
        %366 = vmatprep.subr.mxu0 0.0
        %367 = vmatpush1.xpose.msra.mxu0 0.0
        %368 = vmatprep.subr.mxu0 0.0
        %369 = vmatpush1.xpose.msra.mxu0 0.0
        %370 = vmatprep.subr.mxu0 0.0
        %371 = vmatpush1.xpose.msra.mxu0 0.0
        %372 = vmatprep.subr.mxu0 0.0
        %373 = vmatpush1.xpose.msra.mxu0 0.0
        %374 = vmatprep.subr.mxu0 0.0
        %375 = vmatpush1.xpose.msra.mxu0 0.0
        %376 = vmatprep.subr.mxu0 0.0
        %377 = vmatpush1.xpose.msra.mxu0 0.0
        %378 = vmatprep.subr.mxu0 %v288
        %379 = vmatpush1.xpose.msra.mxu0 %v286
        %380 = vmatprep.subr.mxu0 0.0
        %381 = vmatpush2.xpose.msra.mxu0 0.0
        %382 = vmatprep.subr.mxu0 0.0
        %383 = vmatpush2.xpose.msra.mxu0 0.0
        %384 = vmatprep.subr.mxu0 0.0
        %385 = vmatpush2.xpose.msra.mxu0 0.0
        %386 = vmatprep.subr.mxu0 0.0
        %387 = vmatpush2.xpose.msra.mxu0 0.0
        %388 = vmatprep.subr.mxu0 0.0
        %389 = vmatpush2.xpose.msra.mxu0 0.0
        %390 = vmatprep.subr.mxu0 0.0
        %391 = vmatpush2.xpose.msra.mxu0 0.0
        %392 = vmatprep.subr.mxu0 0.0
        %393 = vmatpush2.xpose.msra.mxu0 0.0
        %394 = vmatprep.subr.mxu0 0.0
        %395 = vmatpush2.xpose.msra.mxu0 0.0
        %396 = vmatprep.subr.mxu0 0.0
        %397 = vmatpush2.xpose.msra.mxu0 0.0
        %398 = vmatprep.subr.mxu0 0.0
        %399 = vmatpush2.xpose.msra.mxu0 0.0
        %400 = vmatprep.subr.mxu0 0.0
        %401 = vmatpush2.xpose.msra.mxu0 0.0
        %402 = vmatprep.subr.mxu0 0.0
        %403 = vmatpush2.xpose.msra.mxu0 0.0
        %404 = vmatprep.subr.mxu0 0.0
        %405 = vmatpush2.xpose.msra.mxu0 0.0
        %406 = vmatprep.subr.mxu0 0.0
        %407 = vmatpush2.xpose.msra.mxu0 0.0
        %408 = vmatprep.subr.mxu0 0.0
        %409 = vmatpush2.xpose.msra.mxu0 0.0
        %410 = vmatprep.subr.mxu0 0.0
        %411 = vmatpush2.xpose.msra.mxu0 0.0
        %412 = vmatprep.mubr.f32.mxu0 %v347
        %413 = vmatmul.mubr.f32.gmra.mxu0 %v346
        %v414 = vpop.f32.mrf.mxu0
        %v415 = vadd.f32 0.0, %v414
        %v416 = vpop.f32.mrf.mxu0
        %417 = vdwg.mxu0
        %v418 = vld [vmem:[%s2] sm:$0xf]
        %v420 = vsel %vm201, %v418, 0
        %v423 = vsel %vm208, %v415, 0
        %425 = vmatprep.subr.mxu0 0.0
        %426 = vmatpush1.msra.mxu0 0.0
        %427 = vmatprep.subr.mxu0 0.0
        %428 = vmatpush1.msra.mxu0 0.0
        %429 = vmatprep.subr.mxu0 0.0
        %430 = vmatpush1.msra.mxu0 0.0
        %431 = vmatprep.subr.mxu0 0.0
        %432 = vmatpush1.msra.mxu0 0.0
        %433 = vmatprep.subr.mxu0 0.0
        %434 = vmatpush1.msra.mxu0 0.0
        %435 = vmatprep.subr.mxu0 0.0
        %436 = vmatpush1.msra.mxu0 0.0
        %437 = vmatprep.subr.mxu0 0.0
        %438 = vmatpush1.msra.mxu0 0.0
        %439 = vmatprep.subr.mxu0 0.0
        %440 = vmatpush1.msra.mxu0 0.0
        %441 = vmatprep.subr.mxu0 0.0
        %442 = vmatpush1.msra.mxu0 0.0
        %443 = vmatprep.subr.mxu0 0.0
        %444 = vmatpush1.msra.mxu0 0.0
        %445 = vmatprep.subr.mxu0 0.0
        %446 = vmatpush1.msra.mxu0 0.0
        %447 = vmatprep.subr.mxu0 0.0
        %448 = vmatpush1.msra.mxu0 0.0
        %449 = vmatprep.subr.mxu0 0.0
        %450 = vmatpush1.msra.mxu0 0.0
        %451 = vmatprep.subr.mxu0 0.0
        %452 = vmatpush1.msra.mxu0 0.0
        %453 = vmatprep.subr.mxu0 0.0
        %454 = vmatpush1.msra.mxu0 0.0
        %455 = vmatprep.subr.mxu0 0.0
        %456 = vmatpush1.msra.mxu0 %v423
        %457 = vmatprep.subr.mxu0 0.0
        %458 = vmatpush2.msra.mxu0 0.0
        %459 = vmatprep.subr.mxu0 0.0
        %460 = vmatpush2.msra.mxu0 0.0
        %461 = vmatprep.subr.mxu0 0.0
        %462 = vmatpush2.msra.mxu0 0.0
        %463 = vmatprep.subr.mxu0 0.0
        %464 = vmatpush2.msra.mxu0 0.0
        %465 = vmatprep.subr.mxu0 0.0
        %466 = vmatpush2.msra.mxu0 0.0
        %467 = vmatprep.subr.mxu0 0.0
        %468 = vmatpush2.msra.mxu0 0.0
        %469 = vmatprep.subr.mxu0 0.0
        %470 = vmatpush2.msra.mxu0 0.0
        %471 = vmatprep.subr.mxu0 0.0
        %472 = vmatpush2.msra.mxu0 0.0
        %473 = vmatprep.subr.mxu0 0.0
        %474 = vmatpush2.msra.mxu0 0.0
        %475 = vmatprep.subr.mxu0 0.0
        %476 = vmatpush2.msra.mxu0 0.0
        %477 = vmatprep.subr.mxu0 0.0
        %478 = vmatpush2.msra.mxu0 0.0
        %479 = vmatprep.subr.mxu0 0.0
        %480 = vmatpush2.msra.mxu0 0.0
        %481 = vmatprep.subr.mxu0 0.0
        %482 = vmatpush2.msra.mxu0 0.0
        %483 = vmatprep.subr.mxu0 0.0
        %484 = vmatpush2.msra.mxu0 0.0
        %485 = vmatprep.subr.mxu0 0.0
        %486 = vmatpush2.msra.mxu0 0.0
        %487 = vmatprep.subr.mxu0 0.0
        %488 = vmatpush2.msra.mxu0 0.0
        %489 = vmatprep.mubr.f32.mxu0 0.0
        %490 = vmatmul.mubr.f32.gmra.mxu0 %v420
        %v491 = vpop.f32.mrf.mxu0
        %v492 = vadd.f32 0.0, %v491
        %v493 = vpop.f32.mrf.mxu0
        %494 = vdwg.mxu0
        %v495 = vld [vmem:[%s3] sm:$0xf]
        %497 = vset.pattern.permute.xlu0 0
        %498 = vperm.xlu0 %497, %v495
        %v499 = vpop.permute.xlu0 %498
        %v503 = vrot.slane %v308, 4
        %v504 = vrot.slane %v309, 4
        %v506 = vsel %vm201, %v492, 0
        %v508 = vsel %vm208, %v503, 0
        %v510 = vsel %vm208, %v504, 0
        %512 = vmatprep.subr.mxu0 0.0
        %513 = vmatpush1.msra.mxu0 0.0
        %514 = vmatprep.subr.mxu0 0.0
        %515 = vmatpush1.msra.mxu0 0.0
        %516 = vmatprep.subr.mxu0 0.0
        %517 = vmatpush1.msra.mxu0 0.0
        %518 = vmatprep.subr.mxu0 0.0
        %519 = vmatpush1.msra.mxu0 0.0
        %520 = vmatprep.subr.mxu0 0.0
        %521 = vmatpush1.msra.mxu0 0.0
        %522 = vmatprep.subr.mxu0 0.0
        %523 = vmatpush1.msra.mxu0 0.0
        %524 = vmatprep.subr.mxu0 0.0
        %525 = vmatpush1.msra.mxu0 0.0
        %526 = vmatprep.subr.mxu0 0.0
        %527 = vmatpush1.msra.mxu0 0.0
        %528 = vmatprep.subr.mxu0 0.0
        %529 = vmatpush1.msra.mxu0 0.0
        %530 = vmatprep.subr.mxu0 0.0
        %531 = vmatpush1.msra.mxu0 0.0
        %532 = vmatprep.subr.mxu0 0.0
        %533 = vmatpush1.msra.mxu0 0.0
        %534 = vmatprep.subr.mxu0 0.0
        %535 = vmatpush1.msra.mxu0 0.0
        %536 = vmatprep.subr.mxu0 0.0
        %537 = vmatpush1.msra.mxu0 0.0
        %538 = vmatprep.subr.mxu0 0.0
        %539 = vmatpush1.msra.mxu0 0.0
        %540 = vmatprep.subr.mxu0 0.0
        %541 = vmatpush1.msra.mxu0 0.0
        %542 = vmatprep.subr.mxu0 %v510
        %543 = vmatpush1.msra.mxu0 %v508
        %544 = vmatprep.subr.mxu0 0.0
        %545 = vmatpush2.msra.mxu0 0.0
        %546 = vmatprep.subr.mxu0 0.0
        %547 = vmatpush2.msra.mxu0 0.0
        %548 = vmatprep.subr.mxu0 0.0
        %549 = vmatpush2.msra.mxu0 0.0
        %550 = vmatprep.subr.mxu0 0.0
        %551 = vmatpush2.msra.mxu0 0.0
        %552 = vmatprep.subr.mxu0 0.0
        %553 = vmatpush2.msra.mxu0 0.0
        %554 = vmatprep.subr.mxu0 0.0
        %555 = vmatpush2.msra.mxu0 0.0
        %556 = vmatprep.subr.mxu0 0.0
        %557 = vmatpush2.msra.mxu0 0.0
        %558 = vmatprep.subr.mxu0 0.0
        %559 = vmatpush2.msra.mxu0 0.0
        %560 = vmatprep.subr.mxu0 0.0
        %561 = vmatpush2.msra.mxu0 0.0
        %562 = vmatprep.subr.mxu0 0.0
        %563 = vmatpush2.msra.mxu0 0.0
        %564 = vmatprep.subr.mxu0 0.0
        %565 = vmatpush2.msra.mxu0 0.0
        %566 = vmatprep.subr.mxu0 0.0
        %567 = vmatpush2.msra.mxu0 0.0
        %568 = vmatprep.subr.mxu0 0.0
        %569 = vmatpush2.msra.mxu0 0.0
        %570 = vmatprep.subr.mxu0 0.0
        %571 = vmatpush2.msra.mxu0 0.0
        %572 = vmatprep.subr.mxu0 0.0
        %573 = vmatpush2.msra.mxu0 0.0
        %574 = vmatprep.subr.mxu0 0.0
        %575 = vmatpush2.msra.mxu0 0.0
        %576 = vmatprep.mubr.f32.mxu0 0.0
        %577 = vmatmul.mubr.f32.gmra.mxu0 %v506
        %v578 = vpop.f32.mrf.mxu0
        %v579 = vadd.f32 %v499, %v578
        %v580 = vpop.f32.mrf.mxu0
        %v581 = vadd.f32 %v499, %v580
        %582 = vdwg.mxu0
        %v585 = vcombine.low %v579, %v581
        %587 = vst [vmem:[%s190] sm:$0xff] %v585
        %s588 = sand.u32 %s115, 1
        %s589 = scalar_lea.sflag [#allocation3], %s588
        %s590 = sand.u32 %s115, 1
        %s591 = smul.addr %s590, 8
        %s592 = scalar_lea.vmem [#allocation2], %s591
        // Predicated region
        $region37: #{tpu_custom_call.1} parent=35 // pred_check
          %p593 = pneg %p125
        $region38: #{tpu_custom_call.1} parent=35 // pred_check_branch
          %595 = sbr.rel (%p593) target = $region40
        $region39: #{tpu_custom_call.1} parent=35 // pred_region
          %s597 = ssub.s32 128, 128
          %598 = vsyncadd %s589, %s597
          %s599 = smul.addr %s18, 2
          %s600 = smul.addr %s599, 64
          %s601 = scalar_lea.hbm %s4, %s600
          %s603 = sshll.u32 %s592, 4
          %s604 = int_to_ptr.vmem [resolvable:$true] %s603
          %606 = dma.vmem_to_hbm [thread:$0]  %s604, 128, %s601, %s589
        $region40: #{tpu_custom_call.1} parent=35 // pred_fallthru
          _
      $region36: #{tpu_custom_call.1} parent=5 // pred_fallthru
        _
      %p607 = scmp.le.s32.totalorder 2, %s13
      // Predicated region
      $region41: #{tpu_custom_call.1} parent=5 // pred_check
        %p608 = pneg %p607
      $region42: #{tpu_custom_call.1} parent=5 // pred_check_branch
        %610 = sbr.rel (%p608) target = $region44
      $region43: #{tpu_custom_call.1} parent=5 // pred_region
        %s611 = ssub.s32 %s13, 2
        // Predicated region
        $region45: #{tpu_custom_call.1} parent=43 // pred_check
          %p612 = pneg %p131
        $region46: #{tpu_custom_call.1} parent=43 // pred_check_branch
          %614 = sbr.rel (%p612) target = $region48
        $region47: #{tpu_custom_call.1} parent=43 // pred_region
          %s615 = sand.u32 %s116, 1
          %s616 = scalar_lea.sflag [#allocation3], %s615
          %s617 = sand.u32 %s116, 1
          %s618 = smul.addr %s617, 8
          %s619 = scalar_lea.vmem [#allocation2], %s618
          %620 = dma.done %s616, 128
        $region48: #{tpu_custom_call.1} parent=43 // pred_fallthru
          _
      $region44: #{tpu_custom_call.1} parent=5 // pred_fallthru
        _
    $region6: #{tpu_custom_call.1} parent=1 // loop_footer
      %s17 = sadd.s32 1, %s13
    $region7: #{tpu_custom_call.1} parent=1 // loop_footer_branch
      %12 = sbr.rel target = $region3
    $region8: #{tpu_custom_call.1} parent=1 // loop_exit
      _
    %621 = vsyncpa [#allocation3], 1
    %s622 = scalar_lea.sflag [#allocation3], 1
    %623 = vsyncpa %s622, 1

</llo_original>
